<compile_context>
chip_gen: v5e
topology: v5e:2x2
jax: 0.10.0
libtpu: 0.0.40
codegen_flags: <defaults>
</compile_context>

<pallas_src>
import jax
import jax.numpy as jnp
from jax.experimental import pallas as pl
from jax.experimental.pallas import tpu as pltpu


def _tspn_kernel(
    nf_ref,        # (TB, N, F)  f32
    adj_ref,       # (TB, N, N)  f32
    w_gc1, b_gc1,  # (F, H) f32, (1, H) f32
    w_gc2, b_gc2,  # (H, H) bf16, (1, H) f32
    w_fc1, b_fc1,  # (H, 256) bf16 (pre-scaled by 1/N), (1, 256) f32
    w_fc2, b_fc2,  # (256, 128) bf16, (1, 128) f32
    w_head, b_head,  # (128, A+1) bf16, (1, A+1) f32   (pi | v fused)
    out_ref,       # (TB, A+1)  f32   -> [:, :A] = pi, [:, A:] = v
):
    TB, N, F = nf_ref.shape
    H = w_gc2.shape[1]
    A1 = w_head.shape[1]
    A = A1 - 1

    nf = nf_ref[...].astype(jnp.float32)      # (TB, N, F)
    adj = adj_ref[...].astype(jnp.float32)    # (TB, N, N)

    # normalized adjacency: adj * 1/(rowsum + 1e-6); reciprocal runs on EUP.
    deg = jnp.sum(adj, axis=-1, keepdims=True) + 1e-6          # (TB, N, 1)
    norm_adj = adj * pl.reciprocal(deg, approx=False)          # (TB, N, N)

    # ---- graph conv 1 -------------------------------------------------------
    # K=3 linear as 3 VPU broadcast-FMAs (lane-dense H=128 result), applied
    # before the node aggregation (matmul associativity: (A@X)@W == A@(X@W)).
    wg1 = w_gc1[...]                                           # (F, H)
    h0 = nf[:, :, 0:1] * wg1[0, :]
    for f in range(1, F):
        h0 = h0 + nf[:, :, f:f + 1] * wg1[f, :]                # (TB, N, H)

    # aggregation: unrolled broadcast-FMA over the N source nodes (VPU only).
    agg1 = norm_adj[:, :, 0:1] * h0[:, 0:1, :]
    for m in range(1, N):
        agg1 = agg1 + norm_adj[:, :, m:m + 1] * h0[:, m:m + 1, :]
    x = jnp.maximum(agg1 + b_gc1[...], 0.0)                    # (TB, N, H)

    # ---- graph conv 2 -------------------------------------------------------
    agg2 = norm_adj[:, :, 0:1] * x[:, 0:1, :]
    for m in range(1, N):
        agg2 = agg2 + norm_adj[:, :, m:m + 1] * x[:, m:m + 1, :]
    x = jnp.dot(agg2.reshape(TB * N, H).astype(jnp.bfloat16),  # MXU, bf16 in
                w_gc2[...],
                preferred_element_type=jnp.float32) + b_gc2[...]
    x = jnp.maximum(x, 0.0)                                    # (TB*N, H) f32

    # ---- node mean (1/N folded into w_fc1 in the wrapper -> sum here) -------
    xs = jnp.sum(x.reshape(TB, N, H), axis=1)                  # (TB, H)

    # ---- MLP trunk (bf16 MXU operands, f32 accumulate) ----------------------
    h = jnp.dot(xs.astype(jnp.bfloat16), w_fc1[...],
                preferred_element_type=jnp.float32) + b_fc1[...]
    h = jnp.maximum(h, 0.0)                                    # (TB, 256)
    h = jnp.dot(h.astype(jnp.bfloat16), w_fc2[...],
                preferred_element_type=jnp.float32) + b_fc2[...]
    h = jnp.maximum(h, 0.0)                                    # (TB, 128)

    # ---- fused policy/value head -------------------------------------------
    head = jnp.dot(h.astype(jnp.bfloat16), w_head[...],
                   preferred_element_type=jnp.float32) + b_head[...]  # (TB, A+1)
    logits = head[:, :A]
    v_raw = head[:, A:A1]

    logits = logits - jnp.max(logits, axis=-1, keepdims=True)
    e = jnp.exp(logits)
    pi = e * pl.reciprocal(jnp.sum(e, axis=-1, keepdims=True), approx=True)
    v = jnp.tanh(v_raw)

    out_ref[...] = jnp.concatenate([pi, v], axis=-1).astype(out_ref.dtype)


def tspn_forward(node_features, adjacency, params, *, tile_b=128):
    """node_features: [B, N, F] f32; adjacency: [B, N, N] f32.
    Returns (pi [B, A], v [B, 1])."""
    B, N, F = node_features.shape
    A = params["w_pi"].shape[1]

    # Batch tiling: TB samples per grid step.  If one step would cover the
    # whole batch and the batch is big enough, split into >=2 steps so both
    # TensorCores get work on v7x (dimension_semantics="parallel").
    TB = min(tile_b, B)
    if TB >= B and B >= 16:
        TB = min(tile_b, (((B + 1) // 2) + 7) // 8 * 8)
    n_steps = pl.cdiv(B, TB)
    Bp = n_steps * TB
    if Bp != B:
        pad = ((0, Bp - B), (0, 0), (0, 0))
        node_features = jnp.pad(node_features, pad)
        adjacency = jnp.pad(adjacency, pad)

    # Pre-cast big-matmul weights to bf16 once (f32 accumulate in-kernel),
    # fold 1/N of the node-mean into w_fc1, and fuse the pi/v heads.
    w_gc2 = params["w_gc2"].astype(jnp.bfloat16)
    w_fc1 = (params["w_fc1"] * (1.0 / N)).astype(jnp.bfloat16)
    w_fc2 = params["w_fc2"].astype(jnp.bfloat16)
    w_head = jnp.concatenate([params["w_pi"], params["w_v"]],
                             axis=1).astype(jnp.bfloat16)       # (128, A+1)
    b_head = jnp.concatenate([params["b_pi"], params["b_v"]], axis=1)

    weight_args = [
        params["w_gc1"], params["b_gc1"],
        w_gc2, params["b_gc2"],
        w_fc1, params["b_fc1"],
        w_fc2, params["b_fc2"],
        w_head, b_head,
    ]

    def full_spec(arr):
        # Constant index_map: fetched once, stays resident across grid steps.
        return pl.BlockSpec(arr.shape, lambda b: (0,) * arr.ndim)

    in_specs = [
        pl.BlockSpec((TB, N, F), lambda b: (b, 0, 0)),
        pl.BlockSpec((TB, N, N), lambda b: (b, 0, 0)),
    ] + [full_spec(w) for w in weight_args]

    out_specs = pl.BlockSpec((TB, A + 1), lambda b: (b, 0))

    # Advisory cost estimate for XLA's scheduler.
    H = params["w_gc1"].shape[1]
    flops_per_sample = (
        2 * N * F * H + 2 * N * N * H          # gc1 linear + aggregation
        + 2 * N * N * H + 2 * N * H * H        # gc2 aggregation + linear
        + 2 * H * 256 + 2 * 256 * 128          # fc1, fc2
        + 2 * 128 * (A + 1)                    # fused head
    )
    cost = pl.CostEstimate(
        flops=int(Bp * flops_per_sample),
        transcendentals=int(Bp * (A + N + 2)),
        bytes_accessed=int(
            4 * (Bp * N * F + Bp * N * N + Bp * (A + 1))
            + sum(int(w.size * w.dtype.itemsize) for w in weight_args)
        ),
    )

    out = pl.pallas_call(
        _tspn_kernel,
        out_shape=jax.ShapeDtypeStruct((Bp, A + 1), jnp.float32),
        grid_spec=pltpu.PrefetchScalarGridSpec(
            num_scalar_prefetch=0,
            grid=(n_steps,),
            in_specs=in_specs,
            out_specs=out_specs,
        ),
        compiler_params=pltpu.CompilerParams(
            dimension_semantics=("parallel",),
            # Footprint is a few MiB at TB<=256; 32 MiB is safe on all gens.
            vmem_limit_bytes=32 * 1024 * 1024,
        ),
        cost_estimate=cost,
    )(node_features, adjacency, *weight_args)

    return out[:B, :A], out[:B, A:]


def init_params(key, num_nodes, action_size,
                node_feature_size=3, hidden_dim=128):
    """Deterministic init matching nn.Linear default uniform(-1/sqrt(fan_in), ...)."""
    def linear(k, fan_in, fan_out):
        kw, kb = jax.random.split(k)
        bound = 1.0 / jnp.sqrt(jnp.float32(fan_in))
        w = jax.random.uniform(kw, (fan_in, fan_out), jnp.float32, -bound, bound)
        b = jax.random.uniform(kb, (1, fan_out), jnp.float32, -bound, bound)
        return w, b

    keys = jax.random.split(key, 6)
    w_gc1, b_gc1 = linear(keys[0], node_feature_size, hidden_dim)
    w_gc2, b_gc2 = linear(keys[1], hidden_dim, hidden_dim)
    w_fc1, b_fc1 = linear(keys[2], hidden_dim, 256)
    w_fc2, b_fc2 = linear(keys[3], 256, 128)
    w_pi, b_pi = linear(keys[4], 128, action_size)
    w_v, b_v = linear(keys[5], 128, 1)
    return dict(
        w_gc1=w_gc1, b_gc1=b_gc1, w_gc2=w_gc2, b_gc2=b_gc2,
        w_fc1=w_fc1, b_fc1=b_fc1, w_fc2=w_fc2, b_fc2=b_fc2,
        w_pi=w_pi, b_pi=b_pi, w_v=w_v, b_v=b_v,
    )


def _reference_forward(node_features, adjacency, p):
    """Pure-JAX f32 reference of the PyTorch forward (eval mode)."""
    def gconv(x, adj, w, b):
        deg = adj.sum(-1, keepdims=True) + 1e-6
        agg = jnp.einsum("bnm,bmf->bnf", adj / deg, x)
        return agg @ w + b[0]

    x = jax.nn.relu(gconv(node_features, adjacency, p["w_gc1"], p["b_gc1"]))
    x = jax.nn.relu(gconv(x, adjacency, p["w_gc2"], p["b_gc2"]))
    x = x.mean(axis=1)
    x = jax.nn.relu(x @ p["w_fc1"] + p["b_fc1"][0])
    x = jax.nn.relu(x @ p["w_fc2"] + p["b_fc2"][0])
    pi = jax.nn.softmax(x @ p["w_pi"] + p["b_pi"][0], axis=1)
    v = jnp.tanh(x @ p["w_v"] + p["b_v"][0])
    return pi, v


def _make_inputs(key, B, N, F):
    k_nf, k_adj = jax.random.split(key)
    node_features = jax.random.uniform(k_nf, (B, N, F), jnp.float32)
    raw = jax.random.uniform(k_adj, (B, N, N), jnp.float32)
    adj = (raw + jnp.swapaxes(raw, 1, 2) > 1.0).astype(jnp.float32)
    adj = adj * (1.0 - jnp.eye(N, dtype=jnp.float32)[None])
    return node_features, adj


if __name__ == "__main__":
    N, F = 8, 3
    A = N  # TSP action size = number of nodes

    key = jax.random.PRNGKey(0)
    k_in1, k_in2, k_in3, k_params = jax.random.split(key, 4)
    params = init_params(k_params, num_nodes=N, action_size=A,
                         node_feature_size=F, hidden_dim=128)

    # bf16 MXU operands (f32 accumulate) => tolerance relaxed vs f32 reference.
    ATOL, RTOL = 2.5e-2, 2.5e-2

    # Test 1: tiny batch (single grid step, whole batch in one block).
    B1 = 2
    nf1, adj1 = _make_inputs(k_in1, B1, N, F)
    pi1, v1 = jax.block_until_ready(tspn_forward(nf1, adj1, params))
    pi1_ref, v1_ref = _reference_forward(nf1, adj1, params)
    assert pi1.shape == (B1, A) and v1.shape == (B1, 1)
    assert jnp.allclose(pi1, pi1_ref, atol=ATOL, rtol=RTOL), "pi mismatch (B=2)"
    assert jnp.allclose(v1, v1_ref, atol=ATOL, rtol=RTOL), "v mismatch (B=2)"

    # Test 2: odd batch -> 2-way split of the tile (>=2 grid steps) + padding.
    B2 = 37
    nf2, adj2 = _make_inputs(k_in2, B2, N, F)
    pi2, v2 = jax.block_until_ready(tspn_forward(nf2, adj2, params))
    pi2_ref, v2_ref = _reference_forward(nf2, adj2, params)
    assert pi2.shape == (B2, A) and v2.shape == (B2, 1)
    assert jnp.allclose(pi2, pi2_ref, atol=ATOL, rtol=RTOL), "pi mismatch (B=37)"
    assert jnp.allclose(v2, v2_ref, atol=ATOL, rtol=RTOL), "v mismatch (B=37)"

    # Test 3: larger batch exercising the full TB=128 tile over multiple steps.
    B3 = 256
    nf3, adj3 = _make_inputs(k_in3, B3, N, F)
    pi3, v3 = jax.block_until_ready(tspn_forward(nf3, adj3, params, tile_b=128))
    pi3_ref, v3_ref = _reference_forward(nf3, adj3, params)
    assert pi3.shape == (B3, A) and v3.shape == (B3, 1)
    assert jnp.allclose(pi3, pi3_ref, atol=ATOL, rtol=RTOL), "pi mismatch (B=256)"
    assert jnp.allclose(v3, v3_ref, atol=ATOL, rtol=RTOL), "v mismatch (B=256)"

    print("KERNEL_OK")
</pallas_src>

<mosaic_0001>
module attributes {stable_mosaic.version = 11 : i64} {
  func.func @_tspn_kernel(%arg0: i32, %arg1: memref<2x8x3xf32, #tpu.memory_space<vmem>>, %arg2: memref<2x8x8xf32, #tpu.memory_space<vmem>>, %arg3: memref<3x128xf32, #tpu.memory_space<vmem>>, %arg4: memref<1x128xf32, #tpu.memory_space<vmem>>, %arg5: memref<128x128xbf16, #tpu.memory_space<vmem>>, %arg6: memref<1x128xf32, #tpu.memory_space<vmem>>, %arg7: memref<128x256xbf16, #tpu.memory_space<vmem>>, %arg8: memref<1x256xf32, #tpu.memory_space<vmem>>, %arg9: memref<256x128xbf16, #tpu.memory_space<vmem>>, %arg10: memref<1x128xf32, #tpu.memory_space<vmem>>, %arg11: memref<128x9xbf16, #tpu.memory_space<vmem>>, %arg12: memref<1x9xf32, #tpu.memory_space<vmem>>, %arg13: memref<2x9xf32, #tpu.memory_space<vmem>>) attributes {dimension_semantics = [#tpu.dimension_semantics<parallel>], iteration_bounds = array<i64: 1>, scalar_prefetch = 0 : i64, scratch_operands = 0 : i64, tpu.core_type = #tpu.core_type<tc>, window_params = [{transform_indices = @transform_0, window_bounds = array<i64: 2, 8, 3>}, {transform_indices = @transform_1, window_bounds = array<i64: 2, 8, 8>}, {pipeline_mode = #tpu.pipeline_mode<synchronous>, transform_indices = @transform_2, window_bounds = array<i64: 3, 128>}, {pipeline_mode = #tpu.pipeline_mode<synchronous>, transform_indices = @transform_3, window_bounds = array<i64: 1, 128>}, {pipeline_mode = #tpu.pipeline_mode<synchronous>, transform_indices = @transform_4, window_bounds = array<i64: 128, 128>}, {pipeline_mode = #tpu.pipeline_mode<synchronous>, transform_indices = @transform_5, window_bounds = array<i64: 1, 128>}, {pipeline_mode = #tpu.pipeline_mode<synchronous>, transform_indices = @transform_6, window_bounds = array<i64: 128, 256>}, {pipeline_mode = #tpu.pipeline_mode<synchronous>, transform_indices = @transform_7, window_bounds = array<i64: 1, 256>}, {pipeline_mode = #tpu.pipeline_mode<synchronous>, transform_indices = @transform_8, window_bounds = array<i64: 256, 128>}, {pipeline_mode = #tpu.pipeline_mode<synchronous>, transform_indices = @transform_9, window_bounds = array<i64: 1, 128>}, {pipeline_mode = #tpu.pipeline_mode<synchronous>, transform_indices = @transform_10, window_bounds = array<i64: 128, 9>}, {pipeline_mode = #tpu.pipeline_mode<synchronous>, transform_indices = @transform_11, window_bounds = array<i64: 1, 9>}, {transform_indices = @transform_12, window_bounds = array<i64: 2, 9>}]} {
    %c0 = arith.constant 0 : index
    %c0_0 = arith.constant 0 : index
    %c0_1 = arith.constant 0 : index
    %0 = vector.load %arg1[%c0, %c0_0, %c0_1] : memref<2x8x3xf32, #tpu.memory_space<vmem>>, vector<2x8x3xf32>
    %c0_2 = arith.constant 0 : index
    %c0_3 = arith.constant 0 : index
    %c0_4 = arith.constant 0 : index
    %1 = vector.load %arg2[%c0_2, %c0_3, %c0_4] : memref<2x8x8xf32, #tpu.memory_space<vmem>>, vector<2x8x8xf32>
    %cst = arith.constant dense<0.000000e+00> : vector<2x8xf32>
    %2 = vector.multi_reduction <add>, %1, %cst [2] : vector<2x8x8xf32> to vector<2x8xf32>
    %3 = vector.shape_cast %2 : vector<2x8xf32> to vector<2x8x1xf32>
    %cst_5 = arith.constant 9.99999997E-7 : f32
    %4 = vector.broadcast %cst_5 : f32 to vector<2x8x1xf32>
    %5 = arith.addf %3, %4 : vector<2x8x1xf32>
    %6 = tpu.reciprocal %5 : vector<2x8x1xf32> -> vector<2x8x1xf32>
    %7 = vector.broadcast %6 : vector<2x8x1xf32> to vector<2x8x8xf32>
    %8 = arith.mulf %1, %7 : vector<2x8x8xf32>
    %c0_6 = arith.constant 0 : index
    %c0_7 = arith.constant 0 : index
    %9 = vector.load %arg3[%c0_6, %c0_7] : memref<3x128xf32, #tpu.memory_space<vmem>>, vector<3x128xf32>
    %10 = vector.extract_strided_slice %0 {offsets = [0, 0, 0], sizes = [2, 8, 1], strides = [1, 1, 1]} : vector<2x8x3xf32> to vector<2x8x1xf32>
    %11 = vector.extract_strided_slice %9 {offsets = [0, 0], sizes = [1, 128], strides = [1, 1]} : vector<3x128xf32> to vector<1x128xf32>
    %12 = vector.shape_cast %11 : vector<1x128xf32> to vector<128xf32>
    %13 = vector.shape_cast %12 : vector<128xf32> to vector<1x1x128xf32>
    %14 = vector.broadcast %10 : vector<2x8x1xf32> to vector<2x8x128xf32>
    %15 = vector.broadcast %13 : vector<1x1x128xf32> to vector<2x8x128xf32>
    %16 = arith.mulf %14, %15 : vector<2x8x128xf32>
    %17 = vector.extract_strided_slice %0 {offsets = [0, 0, 1], sizes = [2, 8, 1], strides = [1, 1, 1]} : vector<2x8x3xf32> to vector<2x8x1xf32>
    %18 = vector.extract_strided_slice %9 {offsets = [1, 0], sizes = [1, 128], strides = [1, 1]} : vector<3x128xf32> to vector<1x128xf32>
    %19 = vector.shape_cast %18 : vector<1x128xf32> to vector<128xf32>
    %20 = vector.shape_cast %19 : vector<128xf32> to vector<1x1x128xf32>
    %21 = vector.broadcast %17 : vector<2x8x1xf32> to vector<2x8x128xf32>
    %22 = vector.broadcast %20 : vector<1x1x128xf32> to vector<2x8x128xf32>
    %23 = arith.mulf %21, %22 : vector<2x8x128xf32>
    %24 = arith.addf %16, %23 : vector<2x8x128xf32>
    %25 = vector.extract_strided_slice %0 {offsets = [0, 0, 2], sizes = [2, 8, 1], strides = [1, 1, 1]} : vector<2x8x3xf32> to vector<2x8x1xf32>
    %26 = vector.extract_strided_slice %9 {offsets = [2, 0], sizes = [1, 128], strides = [1, 1]} : vector<3x128xf32> to vector<1x128xf32>
    %27 = vector.shape_cast %26 : vector<1x128xf32> to vector<128xf32>
    %28 = vector.shape_cast %27 : vector<128xf32> to vector<1x1x128xf32>
    %29 = vector.broadcast %25 : vector<2x8x1xf32> to vector<2x8x128xf32>
    %30 = vector.broadcast %28 : vector<1x1x128xf32> to vector<2x8x128xf32>
    %31 = arith.mulf %29, %30 : vector<2x8x128xf32>
    %32 = arith.addf %24, %31 : vector<2x8x128xf32>
    %33 = vector.extract_strided_slice %8 {offsets = [0, 0, 0], sizes = [2, 8, 1], strides = [1, 1, 1]} : vector<2x8x8xf32> to vector<2x8x1xf32>
    %34 = vector.extract_strided_slice %32 {offsets = [0, 0, 0], sizes = [2, 1, 128], strides = [1, 1, 1]} : vector<2x8x128xf32> to vector<2x1x128xf32>
    %35 = vector.broadcast %33 : vector<2x8x1xf32> to vector<2x8x128xf32>
    %36 = vector.broadcast %34 : vector<2x1x128xf32> to vector<2x8x128xf32>
    %37 = arith.mulf %35, %36 : vector<2x8x128xf32>
    %38 = vector.extract_strided_slice %8 {offsets = [0, 0, 1], sizes = [2, 8, 1], strides = [1, 1, 1]} : vector<2x8x8xf32> to vector<2x8x1xf32>
    %39 = vector.extract_strided_slice %32 {offsets = [0, 1, 0], sizes = [2, 1, 128], strides = [1, 1, 1]} : vector<2x8x128xf32> to vector<2x1x128xf32>
    %40 = vector.broadcast %38 : vector<2x8x1xf32> to vector<2x8x128xf32>
    %41 = vector.broadcast %39 : vector<2x1x128xf32> to vector<2x8x128xf32>
    %42 = arith.mulf %40, %41 : vector<2x8x128xf32>
    %43 = arith.addf %37, %42 : vector<2x8x128xf32>
    %44 = vector.extract_strided_slice %8 {offsets = [0, 0, 2], sizes = [2, 8, 1], strides = [1, 1, 1]} : vector<2x8x8xf32> to vector<2x8x1xf32>
    %45 = vector.extract_strided_slice %32 {offsets = [0, 2, 0], sizes = [2, 1, 128], strides = [1, 1, 1]} : vector<2x8x128xf32> to vector<2x1x128xf32>
    %46 = vector.broadcast %44 : vector<2x8x1xf32> to vector<2x8x128xf32>
    %47 = vector.broadcast %45 : vector<2x1x128xf32> to vector<2x8x128xf32>
    %48 = arith.mulf %46, %47 : vector<2x8x128xf32>
    %49 = arith.addf %43, %48 : vector<2x8x128xf32>
    %50 = vector.extract_strided_slice %8 {offsets = [0, 0, 3], sizes = [2, 8, 1], strides = [1, 1, 1]} : vector<2x8x8xf32> to vector<2x8x1xf32>
    %51 = vector.extract_strided_slice %32 {offsets = [0, 3, 0], sizes = [2, 1, 128], strides = [1, 1, 1]} : vector<2x8x128xf32> to vector<2x1x128xf32>
    %52 = vector.broadcast %50 : vector<2x8x1xf32> to vector<2x8x128xf32>
    %53 = vector.broadcast %51 : vector<2x1x128xf32> to vector<2x8x128xf32>
    %54 = arith.mulf %52, %53 : vector<2x8x128xf32>
    %55 = arith.addf %49, %54 : vector<2x8x128xf32>
    %56 = vector.extract_strided_slice %8 {offsets = [0, 0, 4], sizes = [2, 8, 1], strides = [1, 1, 1]} : vector<2x8x8xf32> to vector<2x8x1xf32>
    %57 = vector.extract_strided_slice %32 {offsets = [0, 4, 0], sizes = [2, 1, 128], strides = [1, 1, 1]} : vector<2x8x128xf32> to vector<2x1x128xf32>
    %58 = vector.broadcast %56 : vector<2x8x1xf32> to vector<2x8x128xf32>
    %59 = vector.broadcast %57 : vector<2x1x128xf32> to vector<2x8x128xf32>
    %60 = arith.mulf %58, %59 : vector<2x8x128xf32>
    %61 = arith.addf %55, %60 : vector<2x8x128xf32>
    %62 = vector.extract_strided_slice %8 {offsets = [0, 0, 5], sizes = [2, 8, 1], strides = [1, 1, 1]} : vector<2x8x8xf32> to vector<2x8x1xf32>
    %63 = vector.extract_strided_slice %32 {offsets = [0, 5, 0], sizes = [2, 1, 128], strides = [1, 1, 1]} : vector<2x8x128xf32> to vector<2x1x128xf32>
    %64 = vector.broadcast %62 : vector<2x8x1xf32> to vector<2x8x128xf32>
    %65 = vector.broadcast %63 : vector<2x1x128xf32> to vector<2x8x128xf32>
    %66 = arith.mulf %64, %65 : vector<2x8x128xf32>
    %67 = arith.addf %61, %66 : vector<2x8x128xf32>
    %68 = vector.extract_strided_slice %8 {offsets = [0, 0, 6], sizes = [2, 8, 1], strides = [1, 1, 1]} : vector<2x8x8xf32> to vector<2x8x1xf32>
    %69 = vector.extract_strided_slice %32 {offsets = [0, 6, 0], sizes = [2, 1, 128], strides = [1, 1, 1]} : vector<2x8x128xf32> to vector<2x1x128xf32>
    %70 = vector.broadcast %68 : vector<2x8x1xf32> to vector<2x8x128xf32>
    %71 = vector.broadcast %69 : vector<2x1x128xf32> to vector<2x8x128xf32>
    %72 = arith.mulf %70, %71 : vector<2x8x128xf32>
    %73 = arith.addf %67, %72 : vector<2x8x128xf32>
    %74 = vector.extract_strided_slice %8 {offsets = [0, 0, 7], sizes = [2, 8, 1], strides = [1, 1, 1]} : vector<2x8x8xf32> to vector<2x8x1xf32>
    %75 = vector.extract_strided_slice %32 {offsets = [0, 7, 0], sizes = [2, 1, 128], strides = [1, 1, 1]} : vector<2x8x128xf32> to vector<2x1x128xf32>
    %76 = vector.broadcast %74 : vector<2x8x1xf32> to vector<2x8x128xf32>
    %77 = vector.broadcast %75 : vector<2x1x128xf32> to vector<2x8x128xf32>
    %78 = arith.mulf %76, %77 : vector<2x8x128xf32>
    %79 = arith.addf %73, %78 : vector<2x8x128xf32>
    %c0_8 = arith.constant 0 : index
    %c0_9 = arith.constant 0 : index
    %80 = vector.load %arg4[%c0_8, %c0_9] : memref<1x128xf32, #tpu.memory_space<vmem>>, vector<1x128xf32>
    %81 = vector.shape_cast %80 : vector<1x128xf32> to vector<1x1x128xf32>
    %82 = vector.broadcast %81 : vector<1x1x128xf32> to vector<2x8x128xf32>
    %83 = arith.addf %79, %82 : vector<2x8x128xf32>
    %cst_10 = arith.constant 0.000000e+00 : f32
    %84 = vector.broadcast %cst_10 : f32 to vector<2x8x128xf32>
    %85 = arith.maximumf %83, %84 : vector<2x8x128xf32>
    %86 = vector.extract_strided_slice %8 {offsets = [0, 0, 0], sizes = [2, 8, 1], strides = [1, 1, 1]} : vector<2x8x8xf32> to vector<2x8x1xf32>
    %87 = vector.extract_strided_slice %85 {offsets = [0, 0, 0], sizes = [2, 1, 128], strides = [1, 1, 1]} : vector<2x8x128xf32> to vector<2x1x128xf32>
    %88 = vector.broadcast %86 : vector<2x8x1xf32> to vector<2x8x128xf32>
    %89 = vector.broadcast %87 : vector<2x1x128xf32> to vector<2x8x128xf32>
    %90 = arith.mulf %88, %89 : vector<2x8x128xf32>
    %91 = vector.extract_strided_slice %8 {offsets = [0, 0, 1], sizes = [2, 8, 1], strides = [1, 1, 1]} : vector<2x8x8xf32> to vector<2x8x1xf32>
    %92 = vector.extract_strided_slice %85 {offsets = [0, 1, 0], sizes = [2, 1, 128], strides = [1, 1, 1]} : vector<2x8x128xf32> to vector<2x1x128xf32>
    %93 = vector.broadcast %91 : vector<2x8x1xf32> to vector<2x8x128xf32>
    %94 = vector.broadcast %92 : vector<2x1x128xf32> to vector<2x8x128xf32>
    %95 = arith.mulf %93, %94 : vector<2x8x128xf32>
    %96 = arith.addf %90, %95 : vector<2x8x128xf32>
    %97 = vector.extract_strided_slice %8 {offsets = [0, 0, 2], sizes = [2, 8, 1], strides = [1, 1, 1]} : vector<2x8x8xf32> to vector<2x8x1xf32>
    %98 = vector.extract_strided_slice %85 {offsets = [0, 2, 0], sizes = [2, 1, 128], strides = [1, 1, 1]} : vector<2x8x128xf32> to vector<2x1x128xf32>
    %99 = vector.broadcast %97 : vector<2x8x1xf32> to vector<2x8x128xf32>
    %100 = vector.broadcast %98 : vector<2x1x128xf32> to vector<2x8x128xf32>
    %101 = arith.mulf %99, %100 : vector<2x8x128xf32>
    %102 = arith.addf %96, %101 : vector<2x8x128xf32>
    %103 = vector.extract_strided_slice %8 {offsets = [0, 0, 3], sizes = [2, 8, 1], strides = [1, 1, 1]} : vector<2x8x8xf32> to vector<2x8x1xf32>
    %104 = vector.extract_strided_slice %85 {offsets = [0, 3, 0], sizes = [2, 1, 128], strides = [1, 1, 1]} : vector<2x8x128xf32> to vector<2x1x128xf32>
    %105 = vector.broadcast %103 : vector<2x8x1xf32> to vector<2x8x128xf32>
    %106 = vector.broadcast %104 : vector<2x1x128xf32> to vector<2x8x128xf32>
    %107 = arith.mulf %105, %106 : vector<2x8x128xf32>
    %108 = arith.addf %102, %107 : vector<2x8x128xf32>
    %109 = vector.extract_strided_slice %8 {offsets = [0, 0, 4], sizes = [2, 8, 1], strides = [1, 1, 1]} : vector<2x8x8xf32> to vector<2x8x1xf32>
    %110 = vector.extract_strided_slice %85 {offsets = [0, 4, 0], sizes = [2, 1, 128], strides = [1, 1, 1]} : vector<2x8x128xf32> to vector<2x1x128xf32>
    %111 = vector.broadcast %109 : vector<2x8x1xf32> to vector<2x8x128xf32>
    %112 = vector.broadcast %110 : vector<2x1x128xf32> to vector<2x8x128xf32>
    %113 = arith.mulf %111, %112 : vector<2x8x128xf32>
    %114 = arith.addf %108, %113 : vector<2x8x128xf32>
    %115 = vector.extract_strided_slice %8 {offsets = [0, 0, 5], sizes = [2, 8, 1], strides = [1, 1, 1]} : vector<2x8x8xf32> to vector<2x8x1xf32>
    %116 = vector.extract_strided_slice %85 {offsets = [0, 5, 0], sizes = [2, 1, 128], strides = [1, 1, 1]} : vector<2x8x128xf32> to vector<2x1x128xf32>
    %117 = vector.broadcast %115 : vector<2x8x1xf32> to vector<2x8x128xf32>
    %118 = vector.broadcast %116 : vector<2x1x128xf32> to vector<2x8x128xf32>
    %119 = arith.mulf %117, %118 : vector<2x8x128xf32>
    %120 = arith.addf %114, %119 : vector<2x8x128xf32>
    %121 = vector.extract_strided_slice %8 {offsets = [0, 0, 6], sizes = [2, 8, 1], strides = [1, 1, 1]} : vector<2x8x8xf32> to vector<2x8x1xf32>
    %122 = vector.extract_strided_slice %85 {offsets = [0, 6, 0], sizes = [2, 1, 128], strides = [1, 1, 1]} : vector<2x8x128xf32> to vector<2x1x128xf32>
    %123 = vector.broadcast %121 : vector<2x8x1xf32> to vector<2x8x128xf32>
    %124 = vector.broadcast %122 : vector<2x1x128xf32> to vector<2x8x128xf32>
    %125 = arith.mulf %123, %124 : vector<2x8x128xf32>
    %126 = arith.addf %120, %125 : vector<2x8x128xf32>
    %127 = vector.extract_strided_slice %8 {offsets = [0, 0, 7], sizes = [2, 8, 1], strides = [1, 1, 1]} : vector<2x8x8xf32> to vector<2x8x1xf32>
    %128 = vector.extract_strided_slice %85 {offsets = [0, 7, 0], sizes = [2, 1, 128], strides = [1, 1, 1]} : vector<2x8x128xf32> to vector<2x1x128xf32>
    %129 = vector.broadcast %127 : vector<2x8x1xf32> to vector<2x8x128xf32>
    %130 = vector.broadcast %128 : vector<2x1x128xf32> to vector<2x8x128xf32>
    %131 = arith.mulf %129, %130 : vector<2x8x128xf32>
    %132 = arith.addf %126, %131 : vector<2x8x128xf32>
    %133 = vector.shape_cast %132 : vector<2x8x128xf32> to vector<16x128xf32>
    %134 = arith.truncf %133 : vector<16x128xf32> to vector<16x128xbf16>
    %c0_11 = arith.constant 0 : index
    %c0_12 = arith.constant 0 : index
    %135 = vector.load %arg5[%c0_11, %c0_12] : memref<128x128xbf16, #tpu.memory_space<vmem>>, vector<128x128xbf16>
    %cst_13 = arith.constant dense<0.000000e+00> : vector<16x128xf32>
    %136 = tpu.matmul %134, %135, %cst_13 {dimension_numbers = #tpu.dot_dimension_numbers<[1], [0], [0], [1], [0, 0, 1, 1], [], []>} : vector<16x128xbf16>, vector<128x128xbf16>, vector<16x128xf32> -> vector<16x128xf32>
    %c0_14 = arith.constant 0 : index
    %c0_15 = arith.constant 0 : index
    %137 = vector.load %arg6[%c0_14, %c0_15] : memref<1x128xf32, #tpu.memory_space<vmem>>, vector<1x128xf32>
    %138 = vector.broadcast %137 : vector<1x128xf32> to vector<16x128xf32>
    %139 = arith.addf %136, %138 : vector<16x128xf32>
    %cst_16 = arith.constant 0.000000e+00 : f32
    %140 = vector.broadcast %cst_16 : f32 to vector<16x128xf32>
    %141 = arith.maximumf %139, %140 : vector<16x128xf32>
    %142 = vector.shape_cast %141 : vector<16x128xf32> to vector<2x8x128xf32>
    %cst_17 = arith.constant dense<0.000000e+00> : vector<2x128xf32>
    %143 = vector.multi_reduction <add>, %142, %cst_17 [1] : vector<2x8x128xf32> to vector<2x128xf32>
    %144 = arith.truncf %143 : vector<2x128xf32> to vector<2x128xbf16>
    %c0_18 = arith.constant 0 : index
    %c0_19 = arith.constant 0 : index
    %145 = vector.load %arg7[%c0_18, %c0_19] : memref<128x256xbf16, #tpu.memory_space<vmem>>, vector<128x256xbf16>
    %cst_20 = arith.constant dense<0.000000e+00> : vector<2x256xf32>
    %146 = tpu.matmul %144, %145, %cst_20 {dimension_numbers = #tpu.dot_dimension_numbers<[1], [0], [0], [1], [0, 0, 1, 1], [], []>} : vector<2x128xbf16>, vector<128x256xbf16>, vector<2x256xf32> -> vector<2x256xf32>
    %c0_21 = arith.constant 0 : index
    %c0_22 = arith.constant 0 : index
    %147 = vector.load %arg8[%c0_21, %c0_22] : memref<1x256xf32, #tpu.memory_space<vmem>>, vector<1x256xf32>
    %148 = vector.broadcast %147 : vector<1x256xf32> to vector<2x256xf32>
    %149 = arith.addf %146, %148 : vector<2x256xf32>
    %cst_23 = arith.constant 0.000000e+00 : f32
    %150 = vector.broadcast %cst_23 : f32 to vector<2x256xf32>
    %151 = arith.maximumf %149, %150 : vector<2x256xf32>
    %152 = arith.truncf %151 : vector<2x256xf32> to vector<2x256xbf16>
    %c0_24 = arith.constant 0 : index
    %c0_25 = arith.constant 0 : index
    %153 = vector.load %arg9[%c0_24, %c0_25] : memref<256x128xbf16, #tpu.memory_space<vmem>>, vector<256x128xbf16>
    %cst_26 = arith.constant dense<0.000000e+00> : vector<2x128xf32>
    %154 = tpu.matmul %152, %153, %cst_26 {dimension_numbers = #tpu.dot_dimension_numbers<[1], [0], [0], [1], [0, 0, 1, 1], [], []>} : vector<2x256xbf16>, vector<256x128xbf16>, vector<2x128xf32> -> vector<2x128xf32>
    %c0_27 = arith.constant 0 : index
    %c0_28 = arith.constant 0 : index
    %155 = vector.load %arg10[%c0_27, %c0_28] : memref<1x128xf32, #tpu.memory_space<vmem>>, vector<1x128xf32>
    %156 = vector.broadcast %155 : vector<1x128xf32> to vector<2x128xf32>
    %157 = arith.addf %154, %156 : vector<2x128xf32>
    %cst_29 = arith.constant 0.000000e+00 : f32
    %158 = vector.broadcast %cst_29 : f32 to vector<2x128xf32>
    %159 = arith.maximumf %157, %158 : vector<2x128xf32>
    %160 = arith.truncf %159 : vector<2x128xf32> to vector<2x128xbf16>
    %c0_30 = arith.constant 0 : index
    %c0_31 = arith.constant 0 : index
    %161 = vector.load %arg11[%c0_30, %c0_31] : memref<128x9xbf16, #tpu.memory_space<vmem>>, vector<128x9xbf16>
    %cst_32 = arith.constant dense<0.000000e+00> : vector<2x9xf32>
    %162 = tpu.matmul %160, %161, %cst_32 {dimension_numbers = #tpu.dot_dimension_numbers<[1], [0], [0], [1], [0, 0, 1, 1], [], []>} : vector<2x128xbf16>, vector<128x9xbf16>, vector<2x9xf32> -> vector<2x9xf32>
    %c0_33 = arith.constant 0 : index
    %c0_34 = arith.constant 0 : index
    %163 = vector.load %arg12[%c0_33, %c0_34] : memref<1x9xf32, #tpu.memory_space<vmem>>, vector<1x9xf32>
    %164 = vector.broadcast %163 : vector<1x9xf32> to vector<2x9xf32>
    %165 = arith.addf %162, %164 : vector<2x9xf32>
    %166 = vector.extract_strided_slice %165 {offsets = [0, 0], sizes = [2, 8], strides = [1, 1]} : vector<2x9xf32> to vector<2x8xf32>
    %167 = vector.extract_strided_slice %165 {offsets = [0, 8], sizes = [2, 1], strides = [1, 1]} : vector<2x9xf32> to vector<2x1xf32>
    %cst_35 = arith.constant dense<0xFF800000> : vector<2xf32>
    %168 = vector.multi_reduction <maximumf>, %166, %cst_35 [1] : vector<2x8xf32> to vector<2xf32>
    %169 = vector.shape_cast %168 : vector<2xf32> to vector<2x1xf32>
    %170 = vector.broadcast %169 : vector<2x1xf32> to vector<2x8xf32>
    %171 = arith.subf %166, %170 : vector<2x8xf32>
    %172 = math.exp %171 : vector<2x8xf32>
    %cst_36 = arith.constant dense<0.000000e+00> : vector<2xf32>
    %173 = vector.multi_reduction <add>, %172, %cst_36 [1] : vector<2x8xf32> to vector<2xf32>
    %174 = vector.shape_cast %173 : vector<2xf32> to vector<2x1xf32>
    %175 = tpu.reciprocal %174 {approx = true} : vector<2x1xf32> -> vector<2x1xf32>
    %176 = vector.broadcast %175 : vector<2x1xf32> to vector<2x8xf32>
    %177 = arith.mulf %172, %176 : vector<2x8xf32>
    %178 = math.tanh %167 : vector<2x1xf32>
    %179 = tpu.concatenate %177, %178 in 1 : vector<2x8xf32>, vector<2x1xf32> -> vector<2x9xf32>
    %c0_37 = arith.constant 0 : index
    %c0_38 = arith.constant 0 : index
    %180 = vector.load %arg13[%c0_37, %c0_38] : memref<2x9xf32, #tpu.memory_space<vmem>>, vector<2x9xf32>
    tpu.vector_store %arg13[%c0_37, %c0_38], %179 {strides = array<i32>} : memref<2x9xf32, #tpu.memory_space<vmem>>, vector<2x9xf32>,
    return
  }
  func.func @transform_0(%arg0: i32) -> (i32, i32, i32) {
    %c0_i32 = arith.constant 0 : i32
    %c0_i32_0 = arith.constant 0 : i32
    %c0_i32_1 = arith.constant 0 : i32
    return %arg0, %c0_i32, %c0_i32_0 : i32, i32, i32
  }
  func.func @transform_1(%arg0: i32) -> (i32, i32, i32) {
    %c0_i32 = arith.constant 0 : i32
    %c0_i32_0 = arith.constant 0 : i32
    %c0_i32_1 = arith.constant 0 : i32
    return %arg0, %c0_i32, %c0_i32_0 : i32, i32, i32
  }
  func.func @transform_2(%arg0: i32) -> (i32, i32) {
    %c0_i32 = arith.constant 0 : i32
    %c0_i32_0 = arith.constant 0 : i32
    %c0_i32_1 = arith.constant 0 : i32
    return %c0_i32, %c0_i32_0 : i32, i32
  }
  func.func @transform_3(%arg0: i32) -> (i32, i32) {
    %c0_i32 = arith.constant 0 : i32
    %c0_i32_0 = arith.constant 0 : i32
    %c0_i32_1 = arith.constant 0 : i32
    return %c0_i32, %c0_i32_0 : i32, i32
  }
  func.func @transform_4(%arg0: i32) -> (i32, i32) {
    %c0_i32 = arith.constant 0 : i32
    %c0_i32_0 = arith.constant 0 : i32
    %c0_i32_1 = arith.constant 0 : i32
    return %c0_i32, %c0_i32_0 : i32, i32
  }
  func.func @transform_5(%arg0: i32) -> (i32, i32) {
    %c0_i32 = arith.constant 0 : i32
    %c0_i32_0 = arith.constant 0 : i32
    %c0_i32_1 = arith.constant 0 : i32
    return %c0_i32, %c0_i32_0 : i32, i32
  }
  func.func @transform_6(%arg0: i32) -> (i32, i32) {
    %c0_i32 = arith.constant 0 : i32
    %c0_i32_0 = arith.constant 0 : i32
    %c0_i32_1 = arith.constant 0 : i32
    return %c0_i32, %c0_i32_0 : i32, i32
  }
  func.func @transform_7(%arg0: i32) -> (i32, i32) {
    %c0_i32 = arith.constant 0 : i32
    %c0_i32_0 = arith.constant 0 : i32
    %c0_i32_1 = arith.constant 0 : i32
    return %c0_i32, %c0_i32_0 : i32, i32
  }
  func.func @transform_8(%arg0: i32) -> (i32, i32) {
    %c0_i32 = arith.constant 0 : i32
    %c0_i32_0 = arith.constant 0 : i32
    %c0_i32_1 = arith.constant 0 : i32
    return %c0_i32, %c0_i32_0 : i32, i32
  }
  func.func @transform_9(%arg0: i32) -> (i32, i32) {
    %c0_i32 = arith.constant 0 : i32
    %c0_i32_0 = arith.constant 0 : i32
    %c0_i32_1 = arith.constant 0 : i32
    return %c0_i32, %c0_i32_0 : i32, i32
  }
  func.func @transform_10(%arg0: i32) -> (i32, i32) {
    %c0_i32 = arith.constant 0 : i32
    %c0_i32_0 = arith.constant 0 : i32
    %c0_i32_1 = arith.constant 0 : i32
    return %c0_i32, %c0_i32_0 : i32, i32
  }
  func.func @transform_11(%arg0: i32) -> (i32, i32) {
    %c0_i32 = arith.constant 0 : i32
    %c0_i32_0 = arith.constant 0 : i32
    %c0_i32_1 = arith.constant 0 : i32
    return %c0_i32, %c0_i32_0 : i32, i32
  }
  func.func @transform_12(%arg0: i32) -> (i32, i32) {
    %c0_i32 = arith.constant 0 : i32
    %c0_i32_0 = arith.constant 0 : i32
    return %arg0, %c0_i32 : i32, i32
  }
}

</mosaic_0001>

<llo_original>
// kernel: tpu_custom_call.1
$region0: #{tpu_custom_call.1}
  #allocation0 [shape = 'u32[]', space=smem, size = 0x4, offset = 0x4, fixed_abs, tag = 'smem constant byte address 0x4 - core index']
  #allocation1 [shape = 'u32[72,128]{1,0:T(1,128)}', space=vmem, size = 0x9000, scoped, tag = 'internal scratch']
  %s0 = inlined_call_operand.vmem [shape: f32[2,8,3], index: 0, kind: input, shape index: {}]
  %s1 = inlined_call_operand.vmem [shape: f32[2,8,8], index: 1, kind: input, shape index: {}]
  %s2 = inlined_call_operand.vmem [shape: f32[3,128], index: 2, kind: input, shape index: {}]
  %s3 = inlined_call_operand.vmem [shape: f32[1,128], index: 3, kind: input, shape index: {}]
  %s4 = inlined_call_operand.vmem [shape: bf16[128,128], index: 4, kind: input, shape index: {}]
  %s5 = inlined_call_operand.vmem [shape: f32[1,128], index: 5, kind: input, shape index: {}]
  %s6 = inlined_call_operand.hbm [shape: bf16[128,256], index: 6, kind: input, shape index: {}]
  %s7 = inlined_call_operand.vmem [shape: f32[1,256], index: 7, kind: input, shape index: {}]
  %s8 = inlined_call_operand.hbm [shape: bf16[256,128], index: 8, kind: input, shape index: {}]
  %s9 = inlined_call_operand.vmem [shape: f32[1,128], index: 9, kind: input, shape index: {}]
  %s10 = inlined_call_operand.vmem [shape: bf16[128,9], index: 10, kind: input, shape index: {}]
  %s11 = inlined_call_operand.vmem [shape: f32[1,9], index: 11, kind: input, shape index: {}]
  %s12 = inlined_call_operand.hbm [shape: f32[2,9], index: 12, kind: output, shape index: {}]
  %s13 = sld [smem:[#allocation0]]
  $region66: #{tpu_custom_call.1} parent=0
    _
  %s15 = ssub.s32 1, %s13
  %s16 = scalar_select 0, %s15, %s13
  $region1: #{tpu_custom_call.1} parent=0
    #allocation2 [shape = 'u8[65536]{0}', space=vmem, size = 0x10000, scoped, tag = 'input window, operand 6, single buffered']
    #allocation3 [shape = 's32[1]{0}', space=sflag, size = 0x4, scoped, tag = 'scoped memory for tpu_custom_call.1']
    #allocation4 [shape = 's32[1]{0}', space=sflag, size = 0x4, scoped, tag = 'scoped memory for tpu_custom_call.1']
    #allocation5 [shape = 'u8[65536]{0}', space=vmem, size = 0x10000, scoped, tag = 'input window, operand 8, single buffered']
    #allocation6 [shape = 's32[1]{0}', space=sflag, size = 0x4, scoped, tag = 'scoped memory for tpu_custom_call.1']
    #allocation7 [shape = 'u8[1024]{0}', space=vmem, size = 0x400, scoped, tag = 'output window, operand 0, single buffered']
    %17 = vsyncpa [#allocation3], 0
    %18 = vsyncpa [#allocation6], 0
    %19 = vsyncpa [#allocation4], 0
    // Predicated region
    $region2: #{tpu_custom_call.1} parent=1 // pred_check
      _
    $region3: #{tpu_custom_call.1} parent=1 // pred_check_branch
      %21 = sbr.rel (0) target = $region5
    $region4: #{tpu_custom_call.1} parent=1 // pred_region
      _
    $region5: #{tpu_custom_call.1} parent=1 // pred_fallthru
      _
    // Predicated region
    $region6: #{tpu_custom_call.1} parent=1 // pred_check
      _
    $region7: #{tpu_custom_call.1} parent=1 // pred_check_branch
      %23 = sbr.rel (0) target = $region9
    $region8: #{tpu_custom_call.1} parent=1 // pred_region
      _
    $region9: #{tpu_custom_call.1} parent=1 // pred_fallthru
      _
    // Predicated region
    $region10: #{tpu_custom_call.1} parent=1 // pred_check
      _
    $region11: #{tpu_custom_call.1} parent=1 // pred_check_branch
      %25 = sbr.rel (0) target = $region13
    $region12: #{tpu_custom_call.1} parent=1 // pred_region
      _
    $region13: #{tpu_custom_call.1} parent=1 // pred_fallthru
      _
    // Predicated region
    $region14: #{tpu_custom_call.1} parent=1 // pred_check
      _
    $region15: #{tpu_custom_call.1} parent=1 // pred_check_branch
      %27 = sbr.rel (0) target = $region17
    $region16: #{tpu_custom_call.1} parent=1 // pred_region
      _
    $region17: #{tpu_custom_call.1} parent=1 // pred_fallthru
      _
    // Predicated region
    $region18: #{tpu_custom_call.1} parent=1 // pred_check
      _
    $region19: #{tpu_custom_call.1} parent=1 // pred_check_branch
      %29 = sbr.rel (0) target = $region21
    $region20: #{tpu_custom_call.1} parent=1 // pred_region
      _
    $region21: #{tpu_custom_call.1} parent=1 // pred_fallthru
      _
    // Predicated region
    $region22: #{tpu_custom_call.1} parent=1 // pred_check
      _
    $region23: #{tpu_custom_call.1} parent=1 // pred_check_branch
      %31 = sbr.rel (0) target = $region25
    $region24: #{tpu_custom_call.1} parent=1 // pred_region
      _
    $region25: #{tpu_custom_call.1} parent=1 // pred_fallthru
      _
    // Predicated region
    $region26: #{tpu_custom_call.1} parent=1 // pred_check
      _
    $region27: #{tpu_custom_call.1} parent=1 // pred_check_branch
      %33 = sbr.rel (0) target = $region29
    $region28: #{tpu_custom_call.1} parent=1 // pred_region
      %35 = vsyncadd [#allocation3], 0
      %s36 = sshll.u32 %s6, 4
      %s37 = int_to_ptr.hbm [resolvable:$true] %s36
      %s38 = sshll.u32 [#allocation2], 4
      %s39 = int_to_ptr.vmem [resolvable:$true] %s38
      %44 = dma.hbm_to_vmem [thread:$0]  %s37, 2048, %s39, [#allocation3], 128, 128, 8
    $region29: #{tpu_custom_call.1} parent=1 // pred_fallthru
      _
    // Predicated region
    $region30: #{tpu_custom_call.1} parent=1 // pred_check
      _
    $region31: #{tpu_custom_call.1} parent=1 // pred_check_branch
      %46 = sbr.rel (0) target = $region33
    $region32: #{tpu_custom_call.1} parent=1 // pred_region
      _
    $region33: #{tpu_custom_call.1} parent=1 // pred_fallthru
      _
    // Predicated region
    $region34: #{tpu_custom_call.1} parent=1 // pred_check
      _
    $region35: #{tpu_custom_call.1} parent=1 // pred_check_branch
      %48 = sbr.rel (0) target = $region37
    $region36: #{tpu_custom_call.1} parent=1 // pred_region
      %50 = vsyncadd [#allocation6], 0
      %s51 = sshll.u32 %s8, 4
      %s52 = int_to_ptr.hbm [resolvable:$true] %s51
      %s53 = sshll.u32 [#allocation5], 4
      %s54 = int_to_ptr.vmem [resolvable:$true] %s53
      %59 = dma.hbm_to_vmem [thread:$0]  %s52, 2048, %s54, [#allocation6], 64, 64, 4
    $region37: #{tpu_custom_call.1} parent=1 // pred_fallthru
      _
    // Predicated region
    $region38: #{tpu_custom_call.1} parent=1 // pred_check
      _
    $region39: #{tpu_custom_call.1} parent=1 // pred_check_branch
      %61 = sbr.rel (0) target = $region41
    $region40: #{tpu_custom_call.1} parent=1 // pred_region
      _
    $region41: #{tpu_custom_call.1} parent=1 // pred_fallthru
      _
    // Predicated region
    $region42: #{tpu_custom_call.1} parent=1 // pred_check
      _
    $region43: #{tpu_custom_call.1} parent=1 // pred_check_branch
      %63 = sbr.rel (0) target = $region45
    $region44: #{tpu_custom_call.1} parent=1 // pred_region
      _
    $region45: #{tpu_custom_call.1} parent=1 // pred_fallthru
      _
    // Predicated region
    $region46: #{tpu_custom_call.1} parent=1 // pred_check
      _
    $region47: #{tpu_custom_call.1} parent=1 // pred_check_branch
      %65 = sbr.rel (0) target = $region49
    $region48: #{tpu_custom_call.1} parent=1 // pred_region
      _
    $region49: #{tpu_custom_call.1} parent=1 // pred_fallthru
      _
    // Predicated region
    $region50: #{tpu_custom_call.1} parent=1 // pred_check
      _
    $region51: #{tpu_custom_call.1} parent=1 // pred_check_branch
      %67 = sbr.rel (0) target = $region53
    $region52: #{tpu_custom_call.1} parent=1 // pred_region
      %69 = dma.done [#allocation3], 2048
    $region53: #{tpu_custom_call.1} parent=1 // pred_fallthru
      _
    // Predicated region
    $region54: #{tpu_custom_call.1} parent=1 // pred_check
      _
    $region55: #{tpu_custom_call.1} parent=1 // pred_check_branch
      %71 = sbr.rel (0) target = $region57
    $region56: #{tpu_custom_call.1} parent=1 // pred_region
      %73 = dma.done [#allocation6], 2048
    $region57: #{tpu_custom_call.1} parent=1 // pred_fallthru
      _
    %v74 = vld [vmem:[%s0] sm:$0xff]
    %v75 = vld [vmem:[%s0 + $0x8] sm:$0xff]
    %v76 = vld [vmem:[%s1] sm:$0xff]
    %v77 = vld [vmem:[%s1 + $0x8] sm:$0xff]
    %vm78 = vcmask 64512
    %v79 = vsel %vm78, %v76, 0.0
    %80 = vadd.xlane.f32.xlu0 %v79
    %v81 = vpop.xlane.xlu0 %80
    %v82 = vsel %vm78, %v77, 0.0
    %83 = vadd.xlane.f32.xlu0 %v82
    %v84 = vpop.xlane.xlu0 %83
    %v85 = vadd.f32 %v81, 1e-06
    %v86 = vadd.f32 %v84, 1e-06
    %v87 = vrcp.pop %v85
    %v88 = vmul.f32 %v85, %v87
    %v89 = vsub.f32 1.0, %v88
    %v90 = vmul.f32 %v87, %v89
    %v91 = vadd.f32 %v87, %v90
    %vm92 = vweird.f32 %v85
    %vm93 = vweird.f32 %v87
    %vm94 = vmor %vm92, %vm93
    %v95 = vsel %vm94, %v87, %v91
    %v96 = vand.u32 2147483647, %v85
    %vm97 = vcmp.eq.f32.partialorder %v96, 8.507059e+37
    %v98 = vand.u32 %v85, 2147483648
    %v99 = vor.u32 1.1754944e-38, %v98
    %v100 = vsel %vm97, %v99, %v95
    %v101 = vrcp.pop %v86
    %v102 = vmul.f32 %v86, %v101
    %v103 = vsub.f32 1.0, %v102
    %v104 = vmul.f32 %v101, %v103
    %v105 = vadd.f32 %v101, %v104
    %vm106 = vweird.f32 %v86
    %vm107 = vweird.f32 %v101
    %vm108 = vmor %vm106, %vm107
    %v109 = vsel %vm108, %v101, %v105
    %v110 = vand.u32 2147483647, %v86
    %vm111 = vcmp.eq.f32.partialorder %v110, 8.507059e+37
    %v112 = vand.u32 %v86, 2147483648
    %v113 = vor.u32 1.1754944e-38, %v112
    %v114 = vsel %vm111, %v113, %v109
    %v115 = vmul.f32 %v76, %v100
    %v116 = vmul.f32 %v77, %v114
    %v117 = vld [vmem:[%s2] sm:$0x7]
    %119 = vset.pattern.permute.xlu0 0
    %120 = vperm.xlu0 %119, %v74
    %v121 = vpop.permute.xlu0 %120
    %124 = vset.pattern.permute.xlu0 0
    %125 = vperm.xlu0 %124, %v75
    %v126 = vpop.permute.xlu0 %125
    %v128 = vperm.slane %v117, 0
    %v129 = vmul.f32 %v121, %v128
    %v130 = vmul.f32 %v126, %v128
    %131 = vset.pattern.permute.xlu0 1
    %132 = vperm.xlu0 %131, %v74
    %v133 = vpop.permute.xlu0 %132
    %135 = vset.pattern.permute.xlu0 1
    %136 = vperm.xlu0 %135, %v75
    %v137 = vpop.permute.xlu0 %136
    %v139 = vperm.slane %v117, 1
    %v140 = vmul.f32 %v133, %v139
    %v141 = vmul.f32 %v137, %v139
    %v142 = vadd.f32 %v129, %v140
    %v143 = vadd.f32 %v130, %v141
    %144 = vset.pattern.permute.xlu0 2
    %145 = vperm.xlu0 %144, %v74
    %v146 = vpop.permute.xlu0 %145
    %148 = vset.pattern.permute.xlu0 2
    %149 = vperm.xlu0 %148, %v75
    %v150 = vpop.permute.xlu0 %149
    %v152 = vperm.slane %v117, 2
    %v153 = vmul.f32 %v146, %v152
    %v154 = vmul.f32 %v150, %v152
    %v155 = vadd.f32 %v142, %v153
    %v156 = vadd.f32 %v143, %v154
    %158 = vset.pattern.permute.xlu0 0
    %159 = vperm.xlu0 %158, %v115
    %v160 = vpop.permute.xlu0 %159
    %163 = vset.pattern.permute.xlu0 0
    %164 = vperm.xlu0 %163, %v116
    %v165 = vpop.permute.xlu0 %164
    %v167 = vperm.slane %v155, 0
    %v168 = vperm.slane %v156, 0
    %v169 = vmul.f32 %v160, %v167
    %v170 = vmul.f32 %v165, %v168
    %171 = vset.pattern.permute.xlu0 1
    %172 = vperm.xlu0 %171, %v115
    %v173 = vpop.permute.xlu0 %172
    %175 = vset.pattern.permute.xlu0 1
    %176 = vperm.xlu0 %175, %v116
    %v177 = vpop.permute.xlu0 %176
    %v179 = vperm.slane %v155, 1
    %v180 = vperm.slane %v156, 1
    %v181 = vmul.f32 %v173, %v179
    %v182 = vmul.f32 %v177, %v180
    %v183 = vadd.f32 %v169, %v181
    %v184 = vadd.f32 %v170, %v182
    %185 = vset.pattern.permute.xlu0 2
    %186 = vperm.xlu0 %185, %v115
    %v187 = vpop.permute.xlu0 %186
    %189 = vset.pattern.permute.xlu0 2
    %190 = vperm.xlu0 %189, %v116
    %v191 = vpop.permute.xlu0 %190
    %v193 = vperm.slane %v155, 2
    %v194 = vperm.slane %v156, 2
    %v195 = vmul.f32 %v187, %v193
    %v196 = vmul.f32 %v191, %v194
    %v197 = vadd.f32 %v183, %v195
    %v198 = vadd.f32 %v184, %v196
    %199 = vset.pattern.permute.xlu0 3
    %200 = vperm.xlu0 %199, %v115
    %v201 = vpop.permute.xlu0 %200
    %203 = vset.pattern.permute.xlu0 3
    %204 = vperm.xlu0 %203, %v116
    %v205 = vpop.permute.xlu0 %204
    %v207 = vperm.slane %v155, 3
    %v208 = vperm.slane %v156, 3
    %v209 = vmul.f32 %v201, %v207
    %v210 = vmul.f32 %v205, %v208
    %v211 = vadd.f32 %v197, %v209
    %v212 = vadd.f32 %v198, %v210
    %213 = vset.pattern.permute.xlu0 4
    %214 = vperm.xlu0 %213, %v115
    %v215 = vpop.permute.xlu0 %214
    %217 = vset.pattern.permute.xlu0 4
    %218 = vperm.xlu0 %217, %v116
    %v219 = vpop.permute.xlu0 %218
    %v221 = vperm.slane %v155, 4
    %v222 = vperm.slane %v156, 4
    %v223 = vmul.f32 %v215, %v221
    %v224 = vmul.f32 %v219, %v222
    %v225 = vadd.f32 %v211, %v223
    %v226 = vadd.f32 %v212, %v224
    %227 = vset.pattern.permute.xlu0 5
    %228 = vperm.xlu0 %227, %v115
    %v229 = vpop.permute.xlu0 %228
    %231 = vset.pattern.permute.xlu0 5
    %232 = vperm.xlu0 %231, %v116
    %v233 = vpop.permute.xlu0 %232
    %v235 = vperm.slane %v155, 5
    %v236 = vperm.slane %v156, 5
    %v237 = vmul.f32 %v229, %v235
    %v238 = vmul.f32 %v233, %v236
    %v239 = vadd.f32 %v225, %v237
    %v240 = vadd.f32 %v226, %v238
    %241 = vset.pattern.permute.xlu0 6
    %242 = vperm.xlu0 %241, %v115
    %v243 = vpop.permute.xlu0 %242
    %245 = vset.pattern.permute.xlu0 6
    %246 = vperm.xlu0 %245, %v116
    %v247 = vpop.permute.xlu0 %246
    %v249 = vperm.slane %v155, 6
    %v250 = vperm.slane %v156, 6
    %v251 = vmul.f32 %v243, %v249
    %v252 = vmul.f32 %v247, %v250
    %v253 = vadd.f32 %v239, %v251
    %v254 = vadd.f32 %v240, %v252
    %255 = vset.pattern.permute.xlu0 7
    %256 = vperm.xlu0 %255, %v115
    %v257 = vpop.permute.xlu0 %256
    %259 = vset.pattern.permute.xlu0 7
    %260 = vperm.xlu0 %259, %v116
    %v261 = vpop.permute.xlu0 %260
    %v263 = vperm.slane %v155, 7
    %v264 = vperm.slane %v156, 7
    %v265 = vmul.f32 %v257, %v263
    %v266 = vmul.f32 %v261, %v264
    %v267 = vadd.f32 %v253, %v265
    %v268 = vadd.f32 %v254, %v266
    %v269 = vld [vmem:[%s3] sm:$0x1]
    %v271 = vperm.slane %v269, 0
    %v273 = vadd.f32 %v267, %v271
    %v274 = vadd.f32 %v268, %v271
    %v275 = vmax.f32 %v273, 0.0
    %v276 = vmax.f32 %v274, 0.0
    %v277 = vperm.slane %v275, 0
    %v278 = vperm.slane %v276, 0
    %v279 = vmul.f32 %v160, %v277
    %v280 = vmul.f32 %v165, %v278
    %v281 = vperm.slane %v275, 1
    %v282 = vperm.slane %v276, 1
    %v283 = vmul.f32 %v173, %v281
    %v284 = vmul.f32 %v177, %v282
    %v285 = vadd.f32 %v279, %v283
    %v286 = vadd.f32 %v280, %v284
    %v287 = vperm.slane %v275, 2
    %v288 = vperm.slane %v276, 2
    %v289 = vmul.f32 %v187, %v287
    %v290 = vmul.f32 %v191, %v288
    %v291 = vadd.f32 %v285, %v289
    %v292 = vadd.f32 %v286, %v290
    %v293 = vperm.slane %v275, 3
    %v294 = vperm.slane %v276, 3
    %v295 = vmul.f32 %v201, %v293
    %v296 = vmul.f32 %v205, %v294
    %v297 = vadd.f32 %v291, %v295
    %v298 = vadd.f32 %v292, %v296
    %v299 = vperm.slane %v275, 4
    %v300 = vperm.slane %v276, 4
    %v301 = vmul.f32 %v215, %v299
    %v302 = vmul.f32 %v219, %v300
    %v303 = vadd.f32 %v297, %v301
    %v304 = vadd.f32 %v298, %v302
    %v305 = vperm.slane %v275, 5
    %v306 = vperm.slane %v276, 5
    %v307 = vmul.f32 %v229, %v305
    %v308 = vmul.f32 %v233, %v306
    %v309 = vadd.f32 %v303, %v307
    %v310 = vadd.f32 %v304, %v308
    %v311 = vperm.slane %v275, 6
    %v312 = vperm.slane %v276, 6
    %v313 = vmul.f32 %v243, %v311
    %v314 = vmul.f32 %v247, %v312
    %v315 = vadd.f32 %v309, %v313
    %v316 = vadd.f32 %v310, %v314
    %v317 = vperm.slane %v275, 7
    %v318 = vperm.slane %v276, 7
    %v319 = vmul.f32 %v257, %v317
    %v320 = vmul.f32 %v261, %v318
    %v321 = vadd.f32 %v315, %v319
    %v322 = vadd.f32 %v316, %v320
    %v323 = vpack.c.bf16 %v322, %v321
    %v324 = vld [vmem:[%s4] sm:$0xf]
    %v325 = vld [vmem:[%s4 + $0x4] sm:$0xf]
    %v326 = vld [vmem:[%s4 + $0x8] sm:$0xf]
    %v327 = vld [vmem:[%s4 + $0xc] sm:$0xf]
    %v328 = vld [vmem:[%s4 + $0x10] sm:$0xf]
    %v329 = vld [vmem:[%s4 + $0x14] sm:$0xf]
    %v330 = vld [vmem:[%s4 + $0x18] sm:$0xf]
    %v331 = vld [vmem:[%s4 + $0x1c] sm:$0xf]
    %v332 = vld [vmem:[%s4 + $0x20] sm:$0xf]
    %v333 = vld [vmem:[%s4 + $0x24] sm:$0xf]
    %v334 = vld [vmem:[%s4 + $0x28] sm:$0xf]
    %v335 = vld [vmem:[%s4 + $0x2c] sm:$0xf]
    %v336 = vld [vmem:[%s4 + $0x30] sm:$0xf]
    %v337 = vld [vmem:[%s4 + $0x34] sm:$0xf]
    %v338 = vld [vmem:[%s4 + $0x38] sm:$0xf]
    %v339 = vld [vmem:[%s4 + $0x3c] sm:$0xf]
    %v340 = vld [vmem:[%s5] sm:$0x1]
    %v342 = vperm.slane %v340, 0
    %v360 = vunpack.c.l.b16 %v324
    %v361 = vunpack.c.l.b16 %v325
    %v362 = vunpack.c.l.b16 %v326
    %v363 = vunpack.c.l.b16 %v327
    %v364 = vunpack.c.l.b16 %v328
    %v365 = vunpack.c.l.b16 %v329
    %v366 = vunpack.c.l.b16 %v330
    %v367 = vunpack.c.l.b16 %v331
    %v368 = vunpack.c.l.b16 %v332
    %v369 = vunpack.c.l.b16 %v333
    %v370 = vunpack.c.l.b16 %v334
    %v371 = vunpack.c.l.b16 %v335
    %v372 = vunpack.c.l.b16 %v336
    %v373 = vunpack.c.l.b16 %v337
    %v374 = vunpack.c.l.b16 %v338
    %v375 = vunpack.c.l.b16 %v339
    %v376 = vpack.c.b16 %v361, %v360
    %v377 = vpack.c.b16 %v363, %v362
    %v378 = vpack.c.b16 %v365, %v364
    %v379 = vpack.c.b16 %v367, %v366
    %v380 = vpack.c.b16 %v369, %v368
    %v381 = vpack.c.b16 %v371, %v370
    %v382 = vpack.c.b16 %v373, %v372
    %v383 = vpack.c.b16 %v375, %v374
    %392 = vmatpush.bf16.msra.mxu0 %v383
    %393 = vmatpush.bf16.msra.mxu0 %v382
    %394 = vmatpush.bf16.msra.mxu0 %v381
    %395 = vmatpush.bf16.msra.mxu0 %v380
    %396 = vmatpush.bf16.msra.mxu0 %v379
    %397 = vmatpush.bf16.msra.mxu0 %v378
    %398 = vmatpush.bf16.msra.mxu0 %v377
    %399 = vmatpush.bf16.msra.mxu0 %v376
    %400 = vmatmul.bf16.gmra.mxu0 %v323
    %v401 = vpop.f32.mrf.mxu0
    %v402 = vadd.f32 %v342, %v401
    %v403 = vpop.f32.mrf.mxu0
    %v404 = vadd.f32 %v342, %v403
    %405 = vdwg.mxu0
    %v406 = vmax.f32 %v402, 0.0
    %v407 = vmax.f32 %v404, 0.0
    %v408 = vrot.slane %v406, 4
    %v409 = vadd.f32 %v406, %v408
    %v410 = vrot.slane %v409, 2
    %v411 = vadd.f32 %v409, %v410
    %v412 = vrot.slane %v411, 1
    %v413 = vadd.f32 %v411, %v412
    %v414 = vrot.slane %v407, 4
    %v415 = vadd.f32 %v407, %v414
    %v416 = vrot.slane %v415, 2
    %v417 = vadd.f32 %v415, %v416
    %v418 = vrot.slane %v417, 1
    %v419 = vadd.f32 %v417, %v418
    %v420 = vpack.c.bf16 %v413, %v413
    %v421 = vpack.c.bf16 %v419, %v419
    %v422 = vld [vmem:[#allocation2] sm:$0xff]
    %v423 = vld [vmem:[#allocation2 + $0x8] sm:$0xff]
    %v424 = vld [vmem:[#allocation2 + $0x10] sm:$0xff]
    %v425 = vld [vmem:[#allocation2 + $0x18] sm:$0xff]
    %v426 = vld [vmem:[#allocation2 + $0x20] sm:$0xff]
    %v427 = vld [vmem:[#allocation2 + $0x28] sm:$0xff]
    %v428 = vld [vmem:[#allocation2 + $0x30] sm:$0xff]
    %v429 = vld [vmem:[#allocation2 + $0x38] sm:$0xff]
    %v430 = vld [vmem:[#allocation2 + $0x40] sm:$0xff]
    %v431 = vld [vmem:[#allocation2 + $0x48] sm:$0xff]
    %v432 = vld [vmem:[#allocation2 + $0x50] sm:$0xff]
    %v433 = vld [vmem:[#allocation2 + $0x58] sm:$0xff]
    %v434 = vld [vmem:[#allocation2 + $0x60] sm:$0xff]
    %v435 = vld [vmem:[#allocation2 + $0x68] sm:$0xff]
    %v436 = vld [vmem:[#allocation2 + $0x70] sm:$0xff]
    %v437 = vld [vmem:[#allocation2 + $0x78] sm:$0xff]
    %v438 = vld [vmem:[%s7] sm:$0x3]
    %v440 = vperm.slane %v438, 0
    %v441 = vperm.slane %v438, 1
    %v446 = vunpack.c.l.b16 %v420
    %v447 = vunpack.c.l.b16 %v421
    %vm448 = vcmask 1041409
    %v449 = vsel %vm448, %v447, %v446
    %v450 = vpack.c.b16 %v449, %v449
    %v468 = vunpack.c.l.b16 %v422
    %v469 = vunpack.c.h.b16 %v422
    %v470 = vunpack.c.l.b16 %v423
    %v471 = vunpack.c.h.b16 %v423
    %v472 = vunpack.c.l.b16 %v424
    %v473 = vunpack.c.h.b16 %v424
    %v474 = vunpack.c.l.b16 %v425
    %v475 = vunpack.c.h.b16 %v425
    %v476 = vunpack.c.l.b16 %v426
    %v477 = vunpack.c.h.b16 %v426
    %v478 = vunpack.c.l.b16 %v427
    %v479 = vunpack.c.h.b16 %v427
    %v480 = vunpack.c.l.b16 %v428
    %v481 = vunpack.c.h.b16 %v428
    %v482 = vunpack.c.l.b16 %v429
    %v483 = vunpack.c.h.b16 %v429
    %v484 = vunpack.c.l.b16 %v430
    %v485 = vunpack.c.h.b16 %v430
    %v486 = vunpack.c.l.b16 %v431
    %v487 = vunpack.c.h.b16 %v431
    %v488 = vunpack.c.l.b16 %v432
    %v489 = vunpack.c.h.b16 %v432
    %v490 = vunpack.c.l.b16 %v433
    %v491 = vunpack.c.h.b16 %v433
    %v492 = vunpack.c.l.b16 %v434
    %v493 = vunpack.c.h.b16 %v434
    %v494 = vunpack.c.l.b16 %v435
    %v495 = vunpack.c.h.b16 %v435
    %v496 = vunpack.c.l.b16 %v436
    %v497 = vunpack.c.h.b16 %v436
    %v498 = vunpack.c.l.b16 %v437
    %v499 = vunpack.c.h.b16 %v437
    %v500 = vpack.c.b16 %v470, %v468
    %v501 = vpack.c.b16 %v471, %v469
    %v502 = vpack.c.b16 %v474, %v472
    %v503 = vpack.c.b16 %v475, %v473
    %v504 = vpack.c.b16 %v478, %v476
    %v505 = vpack.c.b16 %v479, %v477
    %v506 = vpack.c.b16 %v482, %v480
    %v507 = vpack.c.b16 %v483, %v481
    %v508 = vpack.c.b16 %v486, %v484
    %v509 = vpack.c.b16 %v487, %v485
    %v510 = vpack.c.b16 %v490, %v488
    %v511 = vpack.c.b16 %v491, %v489
    %v512 = vpack.c.b16 %v494, %v492
    %v513 = vpack.c.b16 %v495, %v493
    %v514 = vpack.c.b16 %v498, %v496
    %v515 = vpack.c.b16 %v499, %v497
    %532 = vmatpush.bf16.msra.mxu0 %v514
    %533 = vmatpush.bf16.msra.mxu0 %v512
    %534 = vmatpush.bf16.msra.mxu0 %v510
    %535 = vmatpush.bf16.msra.mxu0 %v508
    %536 = vmatpush.bf16.msra.mxu0 %v506
    %537 = vmatpush.bf16.msra.mxu0 %v504
    %538 = vmatpush.bf16.msra.mxu0 %v502
    %539 = vmatpush.bf16.msra.mxu0 %v500
    %540 = vmatmul.bf16.gmra.mxu0 %v450
    %v541 = vpop.f32.mrf.mxu0
    %v542 = vadd.f32 %v440, %v541
    %v543 = vpop.f32.mrf.mxu0
    %544 = vdwg.mxu0
    %545 = vmatpush.bf16.msra.mxu0 %v515
    %546 = vmatpush.bf16.msra.mxu0 %v513
    %547 = vmatpush.bf16.msra.mxu0 %v511
    %548 = vmatpush.bf16.msra.mxu0 %v509
    %549 = vmatpush.bf16.msra.mxu0 %v507
    %550 = vmatpush.bf16.msra.mxu0 %v505
    %551 = vmatpush.bf16.msra.mxu0 %v503
    %552 = vmatpush.bf16.msra.mxu0 %v501
    %553 = vmatmul.bf16.gmra.mxu0 %v450
    %v554 = vpop.f32.mrf.mxu0
    %v555 = vadd.f32 %v441, %v554
    %v556 = vpop.f32.mrf.mxu0
    %557 = vdwg.mxu0
    %v558 = vmax.f32 %v542, 0.0
    %v559 = vmax.f32 %v555, 0.0
    %v560 = vpack.c.bf16 %v558, %v558
    %v561 = vpack.c.bf16 %v559, %v559
    %v562 = vld [vmem:[#allocation5] sm:$0xf]
    %v563 = vld [vmem:[#allocation5 + $0x4] sm:$0xf]
    %v564 = vld [vmem:[#allocation5 + $0x8] sm:$0xf]
    %v565 = vld [vmem:[#allocation5 + $0xc] sm:$0xf]
    %v566 = vld [vmem:[#allocation5 + $0x10] sm:$0xf]
    %v567 = vld [vmem:[#allocation5 + $0x14] sm:$0xf]
    %v568 = vld [vmem:[#allocation5 + $0x18] sm:$0xf]
    %v569 = vld [vmem:[#allocation5 + $0x1c] sm:$0xf]
    %v570 = vld [vmem:[#allocation5 + $0x20] sm:$0xf]
    %v571 = vld [vmem:[#allocation5 + $0x24] sm:$0xf]
    %v572 = vld [vmem:[#allocation5 + $0x28] sm:$0xf]
    %v573 = vld [vmem:[#allocation5 + $0x2c] sm:$0xf]
    %v574 = vld [vmem:[#allocation5 + $0x30] sm:$0xf]
    %v575 = vld [vmem:[#allocation5 + $0x34] sm:$0xf]
    %v576 = vld [vmem:[#allocation5 + $0x38] sm:$0xf]
    %v577 = vld [vmem:[#allocation5 + $0x3c] sm:$0xf]
    %v578 = vld [vmem:[#allocation5 + $0x40] sm:$0xf]
    %v579 = vld [vmem:[#allocation5 + $0x44] sm:$0xf]
    %v580 = vld [vmem:[#allocation5 + $0x48] sm:$0xf]
    %v581 = vld [vmem:[#allocation5 + $0x4c] sm:$0xf]
    %v582 = vld [vmem:[#allocation5 + $0x50] sm:$0xf]
    %v583 = vld [vmem:[#allocation5 + $0x54] sm:$0xf]
    %v584 = vld [vmem:[#allocation5 + $0x58] sm:$0xf]
    %v585 = vld [vmem:[#allocation5 + $0x5c] sm:$0xf]
    %v586 = vld [vmem:[#allocation5 + $0x60] sm:$0xf]
    %v587 = vld [vmem:[#allocation5 + $0x64] sm:$0xf]
    %v588 = vld [vmem:[#allocation5 + $0x68] sm:$0xf]
    %v589 = vld [vmem:[#allocation5 + $0x6c] sm:$0xf]
    %v590 = vld [vmem:[#allocation5 + $0x70] sm:$0xf]
    %v591 = vld [vmem:[#allocation5 + $0x74] sm:$0xf]
    %v592 = vld [vmem:[#allocation5 + $0x78] sm:$0xf]
    %v593 = vld [vmem:[#allocation5 + $0x7c] sm:$0xf]
    %v594 = vld [vmem:[%s9] sm:$0x1]
    %v596 = vperm.slane %v594, 0
    %v630 = vunpack.c.l.b16 %v562
    %v631 = vunpack.c.l.b16 %v563
    %v632 = vunpack.c.l.b16 %v564
    %v633 = vunpack.c.l.b16 %v565
    %v634 = vunpack.c.l.b16 %v566
    %v635 = vunpack.c.l.b16 %v567
    %v636 = vunpack.c.l.b16 %v568
    %v637 = vunpack.c.l.b16 %v569
    %v638 = vunpack.c.l.b16 %v570
    %v639 = vunpack.c.l.b16 %v571
    %v640 = vunpack.c.l.b16 %v572
    %v641 = vunpack.c.l.b16 %v573
    %v642 = vunpack.c.l.b16 %v574
    %v643 = vunpack.c.l.b16 %v575
    %v644 = vunpack.c.l.b16 %v576
    %v645 = vunpack.c.l.b16 %v577
    %v646 = vunpack.c.l.b16 %v578
    %v647 = vunpack.c.l.b16 %v579
    %v648 = vunpack.c.l.b16 %v580
    %v649 = vunpack.c.l.b16 %v581
    %v650 = vunpack.c.l.b16 %v582
    %v651 = vunpack.c.l.b16 %v583
    %v652 = vunpack.c.l.b16 %v584
    %v653 = vunpack.c.l.b16 %v585
    %v654 = vunpack.c.l.b16 %v586
    %v655 = vunpack.c.l.b16 %v587
    %v656 = vunpack.c.l.b16 %v588
    %v657 = vunpack.c.l.b16 %v589
    %v658 = vunpack.c.l.b16 %v590
    %v659 = vunpack.c.l.b16 %v591
    %v660 = vunpack.c.l.b16 %v592
    %v661 = vunpack.c.l.b16 %v593
    %v662 = vpack.c.b16 %v631, %v630
    %v663 = vpack.c.b16 %v633, %v632
    %v664 = vpack.c.b16 %v635, %v634
    %v665 = vpack.c.b16 %v637, %v636
    %v666 = vpack.c.b16 %v639, %v638
    %v667 = vpack.c.b16 %v641, %v640
    %v668 = vpack.c.b16 %v643, %v642
    %v669 = vpack.c.b16 %v645, %v644
    %v670 = vpack.c.b16 %v647, %v646
    %v671 = vpack.c.b16 %v649, %v648
    %v672 = vpack.c.b16 %v651, %v650
    %v673 = vpack.c.b16 %v653, %v652
    %v674 = vpack.c.b16 %v655, %v654
    %v675 = vpack.c.b16 %v657, %v656
    %v676 = vpack.c.b16 %v659, %v658
    %v677 = vpack.c.b16 %v661, %v660
    %694 = vmatpush.bf16.msra.mxu0 %v669
    %695 = vmatpush.bf16.msra.mxu0 %v668
    %696 = vmatpush.bf16.msra.mxu0 %v667
    %697 = vmatpush.bf16.msra.mxu0 %v666
    %698 = vmatpush.bf16.msra.mxu0 %v665
    %699 = vmatpush.bf16.msra.mxu0 %v664
    %700 = vmatpush.bf16.msra.mxu0 %v663
    %701 = vmatpush.bf16.msra.mxu0 %v662
    %702 = vmatmul.bf16.gmra.mxu0 %v560
    %v703 = vpop.f32.mrf.mxu0
    %v704 = vadd.f32 %v596, %v703
    %v705 = vpop.f32.mrf.mxu0
    %706 = vdwg.mxu0
    %707 = vmatpush.bf16.msra.mxu0 %v677
    %708 = vmatpush.bf16.msra.mxu0 %v676
    %709 = vmatpush.bf16.msra.mxu0 %v675
    %710 = vmatpush.bf16.msra.mxu0 %v674
    %711 = vmatpush.bf16.msra.mxu0 %v673
    %712 = vmatpush.bf16.msra.mxu0 %v672
    %713 = vmatpush.bf16.msra.mxu0 %v671
    %714 = vmatpush.bf16.msra.mxu0 %v670
    %715 = vmatmul.bf16.gmra.mxu0 %v561
    %v716 = vpop.f32.mrf.mxu0
    %v717 = vadd.f32 %v704, %v716
    %v718 = vpop.f32.mrf.mxu0
    %719 = vdwg.mxu0
    %v720 = vmax.f32 %v717, 0.0
    %v721 = vpack.c.bf16 %v720, %v720
    %v722 = vld [vmem:[%s10] sm:$0xf]
    %v723 = vld [vmem:[%s10 + $0x4] sm:$0xf]
    %v724 = vld [vmem:[%s10 + $0x8] sm:$0xf]
    %v725 = vld [vmem:[%s10 + $0xc] sm:$0xf]
    %v726 = vld [vmem:[%s10 + $0x10] sm:$0xf]
    %v727 = vld [vmem:[%s10 + $0x14] sm:$0xf]
    %v728 = vld [vmem:[%s10 + $0x18] sm:$0xf]
    %v729 = vld [vmem:[%s10 + $0x1c] sm:$0xf]
    %v730 = vld [vmem:[%s10 + $0x20] sm:$0xf]
    %v731 = vld [vmem:[%s10 + $0x24] sm:$0xf]
    %v732 = vld [vmem:[%s10 + $0x28] sm:$0xf]
    %v733 = vld [vmem:[%s10 + $0x2c] sm:$0xf]
    %v734 = vld [vmem:[%s10 + $0x30] sm:$0xf]
    %v735 = vld [vmem:[%s10 + $0x34] sm:$0xf]
    %v736 = vld [vmem:[%s10 + $0x38] sm:$0xf]
    %v737 = vld [vmem:[%s10 + $0x3c] sm:$0xf]
    %v738 = vld [vmem:[%s11] sm:$0x1]
    %v740 = vperm.slane %v738, 0
    %v758 = vunpack.c.l.b16 %v722
    %v759 = vunpack.c.l.b16 %v723
    %v760 = vunpack.c.l.b16 %v724
    %v761 = vunpack.c.l.b16 %v725
    %v762 = vunpack.c.l.b16 %v726
    %v763 = vunpack.c.l.b16 %v727
    %v764 = vunpack.c.l.b16 %v728
    %v765 = vunpack.c.l.b16 %v729
    %v766 = vunpack.c.l.b16 %v730
    %v767 = vunpack.c.l.b16 %v731
    %v768 = vunpack.c.l.b16 %v732
    %v769 = vunpack.c.l.b16 %v733
    %v770 = vunpack.c.l.b16 %v734
    %v771 = vunpack.c.l.b16 %v735
    %v772 = vunpack.c.l.b16 %v736
    %v773 = vunpack.c.l.b16 %v737
    %v774 = vpack.c.b16 %v759, %v758
    %v775 = vpack.c.b16 %v761, %v760
    %v776 = vpack.c.b16 %v763, %v762
    %v777 = vpack.c.b16 %v765, %v764
    %v778 = vpack.c.b16 %v767, %v766
    %v779 = vpack.c.b16 %v769, %v768
    %v780 = vpack.c.b16 %v771, %v770
    %v781 = vpack.c.b16 %v773, %v772
    %790 = vmatpush.bf16.msra.mxu0 %v781
    %791 = vmatpush.bf16.msra.mxu0 %v780
    %792 = vmatpush.bf16.msra.mxu0 %v779
    %793 = vmatpush.bf16.msra.mxu0 %v778
    %794 = vmatpush.bf16.msra.mxu0 %v777
    %795 = vmatpush.bf16.msra.mxu0 %v776
    %796 = vmatpush.bf16.msra.mxu0 %v775
    %797 = vmatpush.bf16.msra.mxu0 %v774
    %798 = vmatmul.bf16.gmra.mxu0 %v721
    %v799 = vpop.f32.mrf.mxu0
    %v800 = vadd.f32 %v740, %v799
    %v801 = vpop.f32.mrf.mxu0
    %802 = vdwg.mxu0
    %vm803 = vcmask 58368
    %v804 = vsel %vm803, %v800, -inf
    %805 = vmax.xlane.f32.xlu0 %v804
    %v806 = vpop.xlane.xlu0 %805
    %v807 = vsub.f32 %v800, %v806
    %v808 = vmul.f32 %v807, 1.442695
    %v809 = vpow.pop %v808
    %v810 = vsel %vm803, %v809, 0.0
    %811 = vadd.xlane.f32.xlu0 %v810
    %v812 = vpop.xlane.xlu0 %811
    %v813 = vrcp.pop %v812
    %v814 = vmul.f32 %v809, %v813
    %v815 = vtanh.pop %v800
    %v816 = vsel %vm78, %v814, %v815
    %vm817 = vcmask 66560
    %818 = vst.msk [vmem:[#allocation7] sm:$0x3] %vm817, %v816
    // Predicated region
    $region58: #{tpu_custom_call.1} parent=1 // pred_check
      _
    $region59: #{tpu_custom_call.1} parent=1 // pred_check_branch
      %820 = sbr.rel (0) target = $region61
    $region60: #{tpu_custom_call.1} parent=1 // pred_region
      %822 = vsyncadd [#allocation4], 0
      %s824 = sshll.u32 [#allocation7], 4
      %s825 = int_to_ptr.vmem [resolvable:$true] %s824
      %s826 = sshll.u32 %s12, 4
      %s827 = int_to_ptr.hbm [resolvable:$true] %s826
      %829 = dma.vmem_to_hbm [thread:$0]  %s825, 32, %s827, [#allocation4]
    $region61: #{tpu_custom_call.1} parent=1 // pred_fallthru
      _
    // Predicated region
    $region62: #{tpu_custom_call.1} parent=1 // pred_check
      _
    $region63: #{tpu_custom_call.1} parent=1 // pred_check_branch
      %831 = sbr.rel (0) target = $region65
    $region64: #{tpu_custom_call.1} parent=1 // pred_region
      %833 = dma.done [#allocation4], 32
    $region65: #{tpu_custom_call.1} parent=1 // pred_fallthru
      _
    %834 = vsyncpa [#allocation3], 1
    %835 = vsyncpa [#allocation6], 1
    %836 = vsyncpa [#allocation4], 1

</llo_original>
